<compile_context>
chip_gen: v6e
topology: v6e:2x2x1
jax: 0.10.0
libtpu: 0.0.40
codegen_flags: <defaults>
</compile_context>

<pallas_src>
import math
from functools import lru_cache

import jax
import jax.numpy as jnp
from jax.experimental import pallas as pl
from jax.experimental.pallas import tpu as pltpu


# ---------------------------------------------------------------------------
# Generation-aware tuning knobs
# ---------------------------------------------------------------------------
def _device_kind():
    try:
        return jax.devices()[0].device_kind.lower()
    except Exception:
        return ""


_KIND = _device_kind()
_OLD_GEN = any(t in _KIND for t in ("v2", "v3", "v4", "v5"))    # 128-wide MXU
_BIG_VMEM = any(t in _KIND for t in ("v3", "v4", "v5", "v6"))   # 128 MiB physical VMEM
_MXU_N = 128 if _OLD_GEN else 256
_VMEM_LIMIT = (96 if _BIG_VMEM else 48) * 1024 * 1024           # v7x-safe default
_TH_CAP = 4096 if _BIG_VMEM else 2048


# ---------------------------------------------------------------------------
# Pallas kernel 1: valid convolution (matmul hot path of every ConvTranspose2d)
# ---------------------------------------------------------------------------
def _ci_block(c):
    if c <= 256:
        return c
    assert c % 256 == 0
    return 256


def _co_block(c):
    if c >= _MXU_N and c % _MXU_N == 0:
        return _MXU_N
    if c > 128 and c % 128 == 0:
        return 128
    return c


@lru_cache(maxsize=None)
def _conv_call(N, Hp, Wp, Cin, KH, KW, Cout, Ho, Wo, r0, c0):
    """y[n,i,j,co] = sum_{kh,kw,ci} x[n, i+r0+kh, j+c0+kw, ci] * w[kh*KW+kw, ci, co]."""
    KK = KH * KW
    ci_blk, co_blk = _ci_block(Cin), _co_block(Cout)
    n_ci, n_co = Cin // ci_blk, Cout // co_blk
    tap_path = ci_blk >= 128            # per-tap matmuls, no im2col patch
    assert tap_path or n_ci == 1

    wbytes = KK * Cin * Cout * 2        # bf16 weights
    # Fold N into the matmul-M dim only for the genuinely weight-HBM-bound layers
    # (stream each weight block exactly once); otherwise keep a >=2-step parallel
    # batch axis so v7x's second TensorCore has work.
    fold = (Ho * Wo <= 256) and (wbytes >= (1 << 20) or N == 1)
    nb = N if fold else 1
    th = Ho if fold else min(Ho, max(1, _TH_CAP // Wo))
    while Ho % th:                      # (always divides for this net; safety only)
        th -= 1
    n_h = Ho // th
    M = nb * th * Wo

    def kernel(x_ref, w_ref, o_ref, *scratch):
        hb = pl.multiple_of(pl.program_id(1) * th, th) if n_h > 1 else 0

        if not tap_path:
            # Small Cin: im2col patch (K = KK*ci) built once in VMEM, ONE matmul.
            patch_ref = scratch[0]
            for n in range(nb):
                r_lo, r_hi = n * th * Wo, (n + 1) * th * Wo
                for kh in range(KH):
                    for kw in range(KW):
                        t = kh * KW + kw
                        sl = x_ref[n, pl.ds(hb + r0 + kh, th),
                                   c0 + kw:c0 + kw + Wo, :]
                        patch_ref[r_lo:r_hi, t * ci_blk:(t + 1) * ci_blk] = (
                            sl.reshape(th * Wo, ci_blk))
            res = jnp.dot(patch_ref[...].astype(jnp.bfloat16), w_ref[...],
                          preferred_element_type=jnp.float32)
            o_ref[...] = res.reshape(nb, th, Wo, co_blk)
            return

        # Cin block >= 128: each tap is already an MXU-efficient matmul, so skip
        # the patch and accumulate per-tap results (locally over taps, in a 2-D
        # VMEM accumulator across Cin blocks).
        if n_ci > 1:
            acc_ref = scratch[0]

            @pl.when(pl.program_id(3) == 0)
            def _():
                acc_ref[...] = jnp.zeros_like(acc_ref)

        for n in range(nb):
            acc = None
            for kh in range(KH):
                for kw in range(KW):
                    t = kh * KW + kw
                    sl = x_ref[n, pl.ds(hb + r0 + kh, th),
                               c0 + kw:c0 + kw + Wo, :]
                    a = sl.reshape(th * Wo, ci_blk).astype(jnp.bfloat16)
                    d = jnp.dot(a, w_ref[t], preferred_element_type=jnp.float32)
                    acc = d if acc is None else acc + d
            if n_ci == 1:
                o_ref[n] = acc.reshape(th, Wo, co_blk)
            else:
                acc_ref[n * th * Wo:(n + 1) * th * Wo, :] += acc

        if n_ci > 1:
            @pl.when(pl.program_id(3) == n_ci - 1)
            def _():
                o_ref[...] = acc_ref[...].reshape(nb, th, Wo, co_blk)

    if tap_path:
        w_spec = pl.BlockSpec((KK, ci_blk, co_blk), lambda ib, ih, co, ci: (0, ci, co))
    else:
        w_spec = pl.BlockSpec((KK * Cin, co_blk), lambda ib, ih, co, ci: (0, co))

    scratch = []
    if not tap_path:
        scratch.append(pltpu.VMEM((M, KK * ci_blk), jnp.float32))
    elif n_ci > 1:
        scratch.append(pltpu.VMEM((M, co_blk), jnp.float32))

    return pl.pallas_call(
        kernel,
        out_shape=jax.ShapeDtypeStruct((N, Ho, Wo, Cout), jnp.float32),
        grid=(N // nb, n_h, n_co, n_ci),
        in_specs=[
            pl.BlockSpec((nb, Hp, Wp, ci_blk), lambda ib, ih, co, ci: (ib, 0, 0, ci)),
            w_spec,
        ],
        out_specs=pl.BlockSpec((nb, th, Wo, co_blk),
                               lambda ib, ih, co, ci: (ib, ih, 0, co)),
        scratch_shapes=scratch,
        compiler_params=pltpu.CompilerParams(
            dimension_semantics=("parallel", "parallel", "parallel", "arbitrary"),
            vmem_limit_bytes=_VMEM_LIMIT),
    )


def conv2d_valid(xp, w_kk, KH, KW, Ho, Wo, r0=0, c0=0):
    """xp: (N,Hp,Wp,Cin) NHWC f32; w_kk: (KH*KW, Cin, Cout) kernel-ready bf16."""
    N, Hp, Wp, Cin = xp.shape
    KK, _, Cout = w_kk.shape
    if _ci_block(Cin) < 128:             # im2col path wants a pre-flattened weight
        w_kk = w_kk.reshape(KK * Cin, Cout)
    return _conv_call(N, Hp, Wp, Cin, KH, KW, Cout, Ho, Wo, r0, c0)(xp, w_kk)


def conv_transpose_s1(x, layer):
    """ConvTranspose2d(stride=1, padding=p) == 'same' valid conv with flipped kernel."""
    k, pad = layer['k'], layer['pad']
    if pad:
        x = jnp.pad(x, ((0, 0), (pad, pad), (pad, pad), (0, 0)))
    N, Hp, Wp, _ = x.shape
    return conv2d_valid(x, layer['w'], k, k, Hp - k + 1, Wp - k + 1)


def conv_transpose_s2(x, layer):
    """ConvTranspose2d(k=4, stride=2, padding=1) via sub-pixel phase decomposition."""
    # TODO(synk): still 4 phase pallas_calls + plain-JAX depth-to-space interleave.
    N, H, W_, _ = x.shape
    xp = jnp.pad(x, ((0, 0), (1, 1), (1, 1), (0, 0)))
    outs = [conv2d_valid(xp, layer['w'][2 * r + s], 2, 2, H, W_, r0=r, c0=s)
            for r in range(2) for s in range(2)]
    Cout = outs[0].shape[-1]
    ph = jnp.stack(outs, axis=3).reshape(N, H, W_, 2, 2, Cout)
    return ph.transpose(0, 1, 3, 2, 4, 5).reshape(N, 2 * H, 2 * W_, Cout)


# ---------------------------------------------------------------------------
# Pallas kernels 2+3: CustomActivation + BatchNorm2d (training-mode batch stats)
# Lane-dense over a flattened (N*H, W*C) view; pipelined over row tiles.
# ---------------------------------------------------------------------------
def _row_tile(M, WC):
    t = max(1, (512 * 1024) // (WC * 4))      # ~512 KiB blocks
    t = min(t, M)
    while M % t:
        t -= 1
    if t < M and t % 8:
        t = M
    return t


@lru_cache(maxsize=None)
def _act_stats_call(M, WC, tm):
    def kernel(p_ref, x_ref, o_ref):
        k, alpha, beta = p_ref[0], p_ref[1], p_ref[2]
        x = x_ref[...]
        e = k * x                                   # 2*radius*cos(c)*x
        act = jnp.where(x > 0, e + alpha, e - beta)
        s = jnp.sum(act, axis=0, keepdims=True)
        ss = jnp.sum(act * act, axis=0, keepdims=True)

        @pl.when(pl.program_id(0) == 0)
        def _():
            o_ref[...] = jnp.zeros_like(o_ref)

        o_ref[...] += jnp.concatenate([s, ss], axis=0)

    return pl.pallas_call(
        kernel,
        out_shape=jax.ShapeDtypeStruct((2, WC), jnp.float32),
        grid=(M // tm,),
        in_specs=[
            pl.BlockSpec(memory_space=pltpu.MemorySpace.SMEM),
            pl.BlockSpec((tm, WC), lambda i: (i, 0)),
        ],
        out_specs=pl.BlockSpec((2, WC), lambda i: (0, 0)),
        compiler_params=pltpu.CompilerParams(
            dimension_semantics=("arbitrary",),
            vmem_limit_bytes=_VMEM_LIMIT),
    )


@lru_cache(maxsize=None)
def _act_norm_call(M, WC, tm):
    def kernel(p_ref, x_ref, sc_ref, sh_ref, o_ref):
        k, alpha, beta = p_ref[0], p_ref[1], p_ref[2]
        x = x_ref[...]
        e = k * x
        act = jnp.where(x > 0, e + alpha, e - beta)
        o_ref[...] = act * sc_ref[...] + sh_ref[...]

    return pl.pallas_call(
        kernel,
        out_shape=jax.ShapeDtypeStruct((M, WC), jnp.float32),
        grid=(M // tm,),
        in_specs=[
            pl.BlockSpec(memory_space=pltpu.MemorySpace.SMEM),
            pl.BlockSpec((tm, WC), lambda i: (i, 0)),
            pl.BlockSpec((1, WC), lambda i: (0, 0)),
            pl.BlockSpec((1, WC), lambda i: (0, 0)),
        ],
        out_specs=pl.BlockSpec((tm, WC), lambda i: (i, 0)),
        compiler_params=pltpu.CompilerParams(
            dimension_semantics=("parallel",),
            vmem_limit_bytes=_VMEM_LIMIT),
    )


def apply_act(x, p):
    c = (p['theta'] + p['gamma']) * p['delta']
    k = 2.0 * p['radius'] * math.cos(c)        # exp(ic)*(x+ix): real+imag == 2*cos(c)*x
    N, H, W_, C = x.shape
    M, WC = N * H, W_ * C
    tm = _row_tile(M, WC)
    xf = x.reshape(M, WC)                      # free, contiguous reshape
    scal = jnp.array([k, p['alpha'], p['beta']], jnp.float32)

    stats = _act_stats_call(M, WC, tm)(scal, xf)          # (2, W*C) per-lane sums
    cnt = float(N * H * W_)
    s = stats[0].reshape(W_, C).sum(axis=0)
    ss = stats[1].reshape(W_, C).sum(axis=0)
    mean = s / cnt
    var = jnp.maximum(ss / cnt - mean * mean, 0.0)        # biased var (train BN)
    scale_c = p['bn_gamma'].reshape(C) * jax.lax.rsqrt(var + 1e-5)
    shift_c = p['bn_beta'].reshape(C) - mean * scale_c
    scale = jnp.tile(scale_c, W_).reshape(1, WC)
    shift = jnp.tile(shift_c, W_).reshape(1, WC)

    y = _act_norm_call(M, WC, tm)(scal, xf, scale, shift)
    return y.reshape(N, H, W_, C)


# ---------------------------------------------------------------------------
# Glue: bilinear upsample (Upsample(scale=4, bilinear, align_corners=False))
# ---------------------------------------------------------------------------
def _interp_matrix(n_in, scale):
    # TODO(synk): bilinear resize kept in plain JAX (tiny separable matmuls).
    n_out = n_in * scale
    dst = jnp.arange(n_out, dtype=jnp.float32)
    src = jnp.clip((dst + 0.5) / scale - 0.5, 0.0, n_in - 1)
    lo = jnp.floor(src).astype(jnp.int32)
    hi = jnp.minimum(lo + 1, n_in - 1)
    frac = src - lo.astype(jnp.float32)
    m = jnp.zeros((n_out, n_in), jnp.float32)
    m = m.at[jnp.arange(n_out), lo].add(1.0 - frac)
    m = m.at[jnp.arange(n_out), hi].add(frac)
    return m


def bilinear_upsample(x, scale):
    N, H, W_, C = x.shape
    Mh, Mw = _interp_matrix(H, scale), _interp_matrix(W_, scale)
    y = jnp.einsum('oh,nhwc->nowc', Mh, x)
    y = jnp.einsum('pw,nowc->nopc', Mw, y)
    return y


# ---------------------------------------------------------------------------
# Deterministic parameter init (weights pre-flipped / phase-split, stored bf16)
# ---------------------------------------------------------------------------
def make_key_stream(seed):
    base = jax.random.PRNGKey(seed)
    counter = [0]

    def nxt():
        counter[0] += 1
        return jax.random.fold_in(base, counter[0])
    return nxt


def init_convT_s1(kf, cin, cout, k, pad):
    bound = 1.0 / math.sqrt(cin * k * k)
    w = jax.random.uniform(kf(), (cin, cout, k, k), jnp.float32, -bound, bound)
    wk = jnp.transpose(w[:, :, ::-1, ::-1], (2, 3, 0, 1)).reshape(k * k, cin, cout)
    return ('conv1', {'w': wk.astype(jnp.bfloat16), 'k': k, 'pad': pad})


def init_convT_s2(kf, cin, cout):
    # ConvTranspose2d(k=4, s=2, p=1): 4 sub-pixel phase kernels, each (2*2, cin, cout).
    bound = 1.0 / math.sqrt(cin * 16)
    w = jax.random.uniform(kf(), (cin, cout, 4, 4), jnp.float32, -bound, bound)
    phases = []
    for r in range(2):
        for s in range(2):
            taps = jnp.stack([w[:, :, 3 - r - 2 * dy, 3 - s - 2 * dx]
                              for dy in range(2) for dx in range(2)], axis=0)
            phases.append(taps.astype(jnp.bfloat16))
    return ('conv2', {'w': phases})


def init_act(c):
    return {'alpha': 0.0, 'beta': 0.0, 'theta': 1.0, 'radius': 0.5, 'gamma': 0.1,
            'delta': 0.0,
            'bn_gamma': jnp.ones((1, 1, 1, c), jnp.float32),
            'bn_beta': jnp.zeros((1, 1, 1, c), jnp.float32)}


def make_branch(kf, cin, k, pad):
    red, out = cin // 2, cin // 4
    return [init_convT_s1(kf, cin, cin, k, pad), ('act', init_act(cin)),
            init_convT_s2(kf, cin, red), ('act', init_act(red)),
            init_convT_s1(kf, red, red, k, pad), ('act', init_act(red)),
            init_convT_s2(kf, red, out), ('act', init_act(out)),
            init_convT_s1(kf, out, out, k, pad), ('act', init_act(out))]


def make_upblock(kf, cin):
    out = cin // 4
    return {'k1': make_branch(kf, cin, 1, 0),
            'k2': make_branch(kf, cin, 3, 1),
            'k3': make_branch(kf, cin, 5, 2),
            'cc': [init_convT_s1(kf, out * 3, out, 1, 0), ('act', init_act(out)),
                   init_convT_s1(kf, out, out, 5, 2), ('act', init_act(out))],
            'skip': [init_convT_s1(kf, cin, out, 1, 0), ('act', init_act(out)),
                     ('upsample', 4),
                     init_convT_s1(kf, out, out, 3, 1), ('act', init_act(out))],
            'skip_val': 0.0,    # nn.Parameter([0.0])
            'drop_val': 0.0}    # nn.Parameter([0.0]) -> dropout2d(p=0) is identity


def make_generator(nz, seed=0):
    kf = make_key_stream(seed)
    return {'initial': [init_convT_s1(kf, nz, 1024, 1, 0), ('act', init_act(1024))],
            'ups': [make_upblock(kf, 1024), make_upblock(kf, 256),
                    make_upblock(kf, 64), make_upblock(kf, 16)],
            'final': init_convT_s1(kf, 4, 3, 5, 2)}


# ---------------------------------------------------------------------------
# Forward pass
# ---------------------------------------------------------------------------
def apply_seq(x, layers):
    for tag, p in layers:
        if tag == 'conv1':
            x = conv_transpose_s1(x, p)
        elif tag == 'conv2':
            x = conv_transpose_s2(x, p)
        elif tag == 'act':
            x = apply_act(x, p)
        elif tag == 'upsample':
            x = bilinear_upsample(x, p)
    return x


def upblock_forward(x, p):
    k1 = apply_seq(x, p['k1'])
    k2 = apply_seq(x, p['k2'])
    k3 = apply_seq(x, p['k3'])
    cat = jnp.concatenate([k1, k2, k3], axis=-1)      # channel concat (NHWC last axis)
    cor = apply_seq(cat, p['cc'])
    skip = apply_seq(x, p['skip']) * p['skip_val']
    out = cor + skip
    # F.dropout2d(out, p=drop_val=0.0, training=True) is the identity.
    return out


def generator_forward(x_nchw, params):
    x = jnp.transpose(x_nchw, (0, 2, 3, 1)).astype(jnp.float32)  # NCHW -> NHWC
    x = apply_seq(x, params['initial'])
    for up in params['ups']:
        x = upblock_forward(x, up)
    x = conv_transpose_s1(x, params['final'][1])
    return jnp.transpose(x, (0, 3, 1, 2))  # NHWC -> NCHW


if __name__ == "__main__":
    nz, batch = 8, 2
    params = make_generator(nz, seed=0)
    x = jax.random.normal(jax.random.PRNGKey(0), (batch, nz, 1, 1), jnp.float32)

    out = generator_forward(x, params)
    out = jax.block_until_ready(out)

    assert out.shape == (batch, 3, 256, 256), out.shape
    assert bool(jnp.all(jnp.isfinite(out)))
    print("KERNEL_OK")
</pallas_src>

<mosaic_0001>
module attributes {stable_mosaic.version = 11 : i64} {
  func.func @kernel(%arg0: i32, %arg1: i32, %arg2: i32, %arg3: i32, %arg4: memref<1x1x1x8xf32, #tpu.memory_space<vmem>>, %arg5: memref<8x256xbf16, #tpu.memory_space<vmem>>, %arg6: memref<1x1x1x256xf32, #tpu.memory_space<vmem>>, %arg7: memref<1x8xf32, #tpu.memory_space<vmem>>) attributes {dimension_semantics = [#tpu.dimension_semantics<parallel>, #tpu.dimension_semantics<parallel>, #tpu.dimension_semantics<parallel>, #tpu.dimension_semantics<arbitrary>], iteration_bounds = array<i64: 2, 1, 4, 1>, scalar_prefetch = 0 : i64, scratch_operands = 1 : i64, tpu.core_type = #tpu.core_type<tc>, window_params = [{transform_indices = @transform_0, window_bounds = array<i64: 1, 1, 1, 8>}, {transform_indices = @transform_1, window_bounds = array<i64: 8, 256>}, {transform_indices = @transform_2, window_bounds = array<i64: 1, 1, 1, 256>}]} {
    %c0 = arith.constant 0 : index
    %c0_0 = arith.constant 0 : index
    %c0_1 = arith.constant 0 : index
    %c0_2 = arith.constant 0 : index
    %0 = vector.load %arg4[%c0, %c0_0, %c0_1, %c0_2] : memref<1x1x1x8xf32, #tpu.memory_space<vmem>>, vector<1x1x1x8xf32>
    %1 = vector.shape_cast %0 : vector<1x1x1x8xf32> to vector<1x1x8xf32>
    %2 = vector.shape_cast %1 : vector<1x1x8xf32> to vector<1x8xf32>
    %c0_3 = arith.constant 0 : index
    %c0_4 = arith.constant 0 : index
    %3 = vector.load %arg7[%c0_3, %c0_4] : memref<1x8xf32, #tpu.memory_space<vmem>>, vector<1x8xf32>
    tpu.vector_store %arg7[%c0_3, %c0_4], %2 {strides = array<i32>} : memref<1x8xf32, #tpu.memory_space<vmem>>, vector<1x8xf32>,
    %c0_5 = arith.constant 0 : index
    %c0_6 = arith.constant 0 : index
    %4 = vector.load %arg7[%c0_5, %c0_6] : memref<1x8xf32, #tpu.memory_space<vmem>>, vector<1x8xf32>
    %5 = arith.truncf %4 : vector<1x8xf32> to vector<1x8xbf16>
    %c0_7 = arith.constant 0 : index
    %c0_8 = arith.constant 0 : index
    %6 = vector.load %arg5[%c0_7, %c0_8] : memref<8x256xbf16, #tpu.memory_space<vmem>>, vector<8x256xbf16>
    %cst = arith.constant dense<0.000000e+00> : vector<1x256xf32>
    %7 = tpu.matmul %5, %6, %cst {dimension_numbers = #tpu.dot_dimension_numbers<[1], [0], [0], [1], [0, 0, 1, 1], [], []>} : vector<1x8xbf16>, vector<8x256xbf16>, vector<1x256xf32> -> vector<1x256xf32>
    %8 = vector.shape_cast %7 : vector<1x256xf32> to vector<1x1x1x256xf32>
    %c0_9 = arith.constant 0 : index
    %c0_10 = arith.constant 0 : index
    %c0_11 = arith.constant 0 : index
    %c0_12 = arith.constant 0 : index
    %9 = vector.load %arg6[%c0_9, %c0_10, %c0_11, %c0_12] : memref<1x1x1x256xf32, #tpu.memory_space<vmem>>, vector<1x1x1x256xf32>
    tpu.vector_store %arg6[%c0_9, %c0_10, %c0_11, %c0_12], %8 {strides = array<i32>} : memref<1x1x1x256xf32, #tpu.memory_space<vmem>>, vector<1x1x1x256xf32>,
    return
  }
  func.func @transform_0(%arg0: i32, %arg1: i32, %arg2: i32, %arg3: i32) -> (i32, i32, i32, i32) {
    %c0_i32 = arith.constant 0 : i32
    %c0_i32_0 = arith.constant 0 : i32
    %c0_i32_1 = arith.constant 0 : i32
    return %arg0, %c0_i32, %c0_i32_0, %arg3 : i32, i32, i32, i32
  }
  func.func @transform_1(%arg0: i32, %arg1: i32, %arg2: i32, %arg3: i32) -> (i32, i32) {
    %c0_i32 = arith.constant 0 : i32
    %c0_i32_0 = arith.constant 0 : i32
    return %c0_i32, %arg2 : i32, i32
  }
  func.func @transform_2(%arg0: i32, %arg1: i32, %arg2: i32, %arg3: i32) -> (i32, i32, i32, i32) {
    %c0_i32 = arith.constant 0 : i32
    %c0_i32_0 = arith.constant 0 : i32
    return %arg0, %arg1, %c0_i32, %arg2 : i32, i32, i32, i32
  }
}

</mosaic_0001>

<llo_original>
// kernel: tpu_custom_call.1
$region0: #{tpu_custom_call.1}
  #allocation0 [shape = 'u32[]', space=smem, size = 0x4, offset = 0x4, fixed_abs, tag = 'smem constant byte address 0x4 - core index']
  #allocation1 [shape = 'u32[144,128]{1,0:T(1,128)}', space=vmem, size = 0x12000, scoped, tag = 'internal scratch']
  #allocation2 [shape = 'f32[1,8]{1,0:T(1,128)}', space=vmem, size = 0x200, scoped, tag = 'scratch operand']
  %s0 = inlined_call_operand.hbm [shape: f32[2,1,1,8], index: 0, kind: input, shape index: {}]
  %s1 = inlined_call_operand.hbm [shape: bf16[8,1024], index: 1, kind: input, shape index: {}]
  %s2 = inlined_call_operand.hbm [shape: f32[2,1,1,1024], index: 2, kind: output, shape index: {}]
  %s3 = sld [smem:[#allocation0]]
  $region49: #{tpu_custom_call.1} parent=0
    _
  %s5 = ssub.s32 1, %s3
  %s6 = scalar_select 0, %s5, %s3
  $region1: #{tpu_custom_call.1} parent=0
    #allocation3 [shape = 'u8[1024]{0}', space=vmem, size = 0x400, scoped, tag = 'input window, operand 0']
    #allocation4 [shape = 's32[2]{0}', space=sflag, size = 0x8, scoped, tag = 'scoped memory for tpu_custom_call.1']
    #allocation5 [shape = 's32[2]{0}', space=sflag, size = 0x8, scoped, tag = 'scoped memory for tpu_custom_call.1']
    #allocation6 [shape = 'u8[8192]{0}', space=vmem, size = 0x2000, scoped, tag = 'input window, operand 1']
    #allocation7 [shape = 's32[2]{0}', space=sflag, size = 0x8, scoped, tag = 'scoped memory for tpu_custom_call.1']
    #allocation8 [shape = 'u8[2048]{0}', space=vmem, size = 0x800, scoped, tag = 'output window, operand 0']
    %7 = vsyncpa [#allocation4], 0
    %s8 = scalar_lea.sflag [#allocation4], 1
    %9 = vsyncpa %s8, 0
    %10 = vsyncpa [#allocation7], 0
    %s11 = scalar_lea.sflag [#allocation7], 1
    %12 = vsyncpa %s11, 0
    %13 = vsyncpa [#allocation5], 0
    %s14 = scalar_lea.sflag [#allocation5], 1
    %15 = vsyncpa %s14, 0
    loop: start=0, step=1, limit=10
    $region2: #{tpu_custom_call.1} parent=1 // loop_pre_header
      _
    $region3: #{tpu_custom_call.1} parent=1 // loop_header
      %s17 = sphi 0, %s21
      %p18 = scmp.ge.s32.totalorder %s17, 10
      %s24 = sphi 0, %s50
      %s25 = sphi 0, %s46
      %s26 = sphi 0, %s42
      %s27 = sphi 0, %s38
      %s28 = sphi 0, %s24
      %s29 = sphi 0, %s25
      %s30 = sphi 0, %s26
      %s31 = sphi 0, %s27
      %s32 = sphi 0, %s28
      %s33 = sphi 0, %s29
      %s34 = sphi 0, %s30
      %s35 = sphi 0, %s31
      %s55 = sphi 0, %s57
      %s58 = sphi 0, %s55
      %s59 = sphi 0, %s58
      %s75 = sphi 0, %s59
      %s81 = sphi 0, %s83
      %s84 = sphi 0, %s81
      %s85 = sphi 0, %s84
      %s101 = sphi 0, %s85
      %s111 = sphi 0, %s113
      %s114 = sphi 0, %s111
      %s115 = sphi 0, %s114
      %s131 = sphi 0, %s115
    $region4: #{tpu_custom_call.1} parent=1 // loop_header_branch
      %20 = sbr.rel (%p18) target = $region8
    $region5: #{tpu_custom_call.1} parent=1 // loop_body
      %s22 = ssub.s32 %s17, 1
      %s23 = ssub.s32 %s17, 2
      %s36 = sadd.s32 1, %s27
      %p37 = scmp.ge.s32.totalorder %s36, 1
      %s38 = scalar_select %p37, 0, %s36
      %s39 = sadd.s32 1, %s26
      %s40 = scalar_select %p37, %s39, %s26
      %p41 = scmp.ge.s32.totalorder %s40, 4
      %s42 = scalar_select %p41, 0, %s40
      %s43 = sadd.s32 1, %s25
      %s44 = scalar_select %p41, %s43, %s25
      %p45 = scmp.ge.s32.totalorder %s44, 1
      %s46 = scalar_select %p45, 0, %s44
      %s47 = sadd.s32 1, %s24
      %s48 = scalar_select %p45, %s47, %s24
      %p49 = scmp.ge.s32.totalorder %s48, 2
      %s50 = scalar_select %p49, 0, %s48
      %s51 = ssub.s32 %s24, %s50
      %s52 = ssub.s32 %s27, %s38
      %s53 = sor.u32 %s51, %s52
      %p54 = scmp.eq.s32.totalorder %s53, 0
      %s56 = sadd.s32 %s55, 1
      %s57 = scalar_select %p54, %s55, %s56
      %p60 = pneg %p54
      %p61 = scmp.eq.s32.totalorder %s17, 7
      %p62 = por %p60, %p61
      %p63 = scmp.ne.s32.totalorder %s55, %s58
      %p64 = scmp.eq.s32.totalorder %s17, 0
      %p65 = por %p63, %p64
      %p66 = scmp.ne.s32.totalorder %s55, %s58
      %p67 = scmp.eq.s32.totalorder %s22, 7
      %p68 = por %p66, %p67
      %p69 = scmp.ne.s32.totalorder %s58, %s59
      %p70 = scmp.eq.s32.totalorder %s22, 0
      %p71 = por %p69, %p70
      %p72 = scmp.ne.s32.totalorder %s58, %s59
      %p73 = scmp.eq.s32.totalorder %s23, 7
      %p74 = por %p72, %p73
      %p76 = scmp.ne.s32.totalorder %s59, %s75
      %p77 = scmp.eq.s32.totalorder %s23, 0
      %p78 = por %p76, %p77
      %s79 = ssub.s32 %s26, %s42
      %p80 = scmp.eq.s32.totalorder %s79, 0
      %s82 = sadd.s32 %s81, 1
      %s83 = scalar_select %p80, %s81, %s82
      %p86 = pneg %p80
      %p87 = scmp.eq.s32.totalorder %s17, 7
      %p88 = por %p86, %p87
      %p89 = scmp.ne.s32.totalorder %s81, %s84
      %p90 = scmp.eq.s32.totalorder %s17, 0
      %p91 = por %p89, %p90
      %p92 = scmp.ne.s32.totalorder %s81, %s84
      %p93 = scmp.eq.s32.totalorder %s22, 7
      %p94 = por %p92, %p93
      %p95 = scmp.ne.s32.totalorder %s84, %s85
      %p96 = scmp.eq.s32.totalorder %s22, 0
      %p97 = por %p95, %p96
      %p98 = scmp.ne.s32.totalorder %s84, %s85
      %p99 = scmp.eq.s32.totalorder %s23, 7
      %p100 = por %p98, %p99
      %p102 = scmp.ne.s32.totalorder %s85, %s101
      %p103 = scmp.eq.s32.totalorder %s23, 0
      %p104 = por %p102, %p103
      %s105 = ssub.s32 %s24, %s50
      %s106 = ssub.s32 %s25, %s46
      %s107 = sor.u32 %s105, %s106
      %s108 = ssub.s32 %s26, %s42
      %s109 = sor.u32 %s107, %s108
      %p110 = scmp.eq.s32.totalorder %s109, 0
      %s112 = sadd.s32 %s111, 1
      %s113 = scalar_select %p110, %s111, %s112
      %p116 = pneg %p110
      %p117 = scmp.eq.s32.totalorder %s17, 7
      %p118 = por %p116, %p117
      %p119 = scmp.ne.s32.totalorder %s111, %s114
      %p120 = scmp.eq.s32.totalorder %s17, 0
      %p121 = por %p119, %p120
      %p122 = scmp.ne.s32.totalorder %s111, %s114
      %p123 = scmp.eq.s32.totalorder %s22, 7
      %p124 = por %p122, %p123
      %p125 = scmp.ne.s32.totalorder %s114, %s115
      %p126 = scmp.eq.s32.totalorder %s22, 0
      %p127 = por %p125, %p126
      %p128 = scmp.ne.s32.totalorder %s114, %s115
      %p129 = scmp.eq.s32.totalorder %s23, 7
      %p130 = por %p128, %p129
      %p132 = scmp.ne.s32.totalorder %s115, %s131
      %p133 = scmp.eq.s32.totalorder %s23, 0
      %p134 = por %p132, %p133
      %p135 = scmp.le.s32.totalorder 1, %s17
      %p136 = scmp.lt.s32.totalorder %s17, 9
      %p137 = pnand %p135, %p136
      %p138 = pneg %p137
      // Predicated region
      $region9: #{tpu_custom_call.1} parent=5 // pred_check
        _
      $region10: #{tpu_custom_call.1} parent=5 // pred_check_branch
        %140 = sbr.rel (%p137) target = $region12
      $region11: #{tpu_custom_call.1} parent=5 // pred_region
        %s141 = ssub.s32 %s17, 1
      $region12: #{tpu_custom_call.1} parent=5 // pred_fallthru
        _
      %p142 = scmp.lt.s32.totalorder %s17, 8
      // Predicated region
      $region13: #{tpu_custom_call.1} parent=5 // pred_check
        %p143 = pneg %p142
      $region14: #{tpu_custom_call.1} parent=5 // pred_check_branch
        %145 = sbr.rel (%p143) target = $region16
      $region15: #{tpu_custom_call.1} parent=5 // pred_region
        // Predicated region
        $region17: #{tpu_custom_call.1} parent=15 // pred_check
          %p146 = pneg %p65
        $region18: #{tpu_custom_call.1} parent=15 // pred_check_branch
          %148 = sbr.rel (%p146) target = $region20
        $region19: #{tpu_custom_call.1} parent=15 // pred_region
          %s149 = sand.u32 %s55, 1
          %s150 = scalar_lea.sflag [#allocation4], %s149
          %s151 = sand.u32 %s55, 1
          %s152 = scalar_lea.vmem [#allocation3], %s151
          %s154 = ssub.s32 16, 16
          %155 = vsyncadd %s150, %s154
          %s156 = sadd.s32 %s27, %s24
          %s157 = smul.addr %s156, 16
          %s158 = scalar_lea.hbm %s0, %s157
          %s160 = sshll.u32 %s152, 4
          %s161 = int_to_ptr.vmem [resolvable:$true] %s160
          %163 = dma.hbm_to_vmem [thread:$0]  %s158, 16, %s161, %s150
        $region20: #{tpu_custom_call.1} parent=15 // pred_fallthru
          _
        // Predicated region
        $region21: #{tpu_custom_call.1} parent=15 // pred_check
          %p164 = pneg %p91
        $region22: #{tpu_custom_call.1} parent=15 // pred_check_branch
          %166 = sbr.rel (%p164) target = $region24
        $region23: #{tpu_custom_call.1} parent=15 // pred_region
          %s167 = sand.u32 %s81, 1
          %s168 = scalar_lea.sflag [#allocation7], %s167
          %s169 = sand.u32 %s81, 1
          %s170 = smul.addr %s169, 8
          %s171 = scalar_lea.vmem [#allocation6], %s170
          %s172 = smul.u32 2, %s26
          %s174 = ssub.s32 128, 128
          %175 = vsyncadd %s168, %s174
          %s176 = smul.addr %s172, 64
          %s177 = scalar_lea.hbm %s1, %s176
          %s179 = sshll.u32 %s171, 4
          %s180 = int_to_ptr.vmem [resolvable:$true] %s179
          %182 = dma.hbm_to_vmem [thread:$0]  %s177, 128, %s180, %s168
        $region24: #{tpu_custom_call.1} parent=15 // pred_fallthru
          _
      $region16: #{tpu_custom_call.1} parent=5 // pred_fallthru
        _
      %p183 = scmp.le.s32.totalorder 1, %s17
      %p184 = scmp.lt.s32.totalorder %s17, 9
      %p185 = pnand %p183, %p184
      %p186 = pneg %p185
      // Predicated region
      $region25: #{tpu_custom_call.1} parent=5 // pred_check
        _
      $region26: #{tpu_custom_call.1} parent=5 // pred_check_branch
        %188 = sbr.rel (%p185) target = $region28
      $region27: #{tpu_custom_call.1} parent=5 // pred_region
        %s189 = ssub.s32 %s17, 1
        %s190 = sand.u32 %s58, 1
        %s191 = scalar_lea.sflag [#allocation4], %s190
        %s192 = sand.u32 %s58, 1
        %s193 = scalar_lea.vmem [#allocation3], %s192
        // Predicated region
        $region29: #{tpu_custom_call.1} parent=27 // pred_check
          %p194 = pneg %p71
        $region30: #{tpu_custom_call.1} parent=27 // pred_check_branch
          %196 = sbr.rel (%p194) target = $region32
        $region31: #{tpu_custom_call.1} parent=27 // pred_region
          %197 = dma.done %s191, 16
        $region32: #{tpu_custom_call.1} parent=27 // pred_fallthru
          _
        %s198 = sand.u32 %s84, 1
        %s199 = scalar_lea.sflag [#allocation7], %s198
        %s200 = sand.u32 %s84, 1
        %s201 = smul.addr %s200, 8
        %s202 = scalar_lea.vmem [#allocation6], %s201
        // Predicated region
        $region33: #{tpu_custom_call.1} parent=27 // pred_check
          %p203 = pneg %p97
        $region34: #{tpu_custom_call.1} parent=27 // pred_check_branch
          %205 = sbr.rel (%p203) target = $region36
        $region35: #{tpu_custom_call.1} parent=27 // pred_region
          %206 = dma.done %s199, 128
        $region36: #{tpu_custom_call.1} parent=27 // pred_fallthru
          _
        %s207 = sand.u32 %s58, 1
        %s208 = scalar_lea.sflag [#allocation4], %s207
        %s209 = sand.u32 %s58, 1
        %s210 = scalar_lea.vmem [#allocation3], %s209
        %p211 = pneg %p71
        %p212 = pneg %p68
        %s213 = sand.u32 %s84, 1
        %s214 = scalar_lea.sflag [#allocation7], %s213
        %s215 = sand.u32 %s84, 1
        %s216 = smul.addr %s215, 8
        %s217 = scalar_lea.vmem [#allocation6], %s216
        %p218 = pneg %p97
        %p219 = pneg %p94
        %p220 = pneg %p127
        %p221 = pneg %p124
        %s222 = sand.u32 %s114, 1
        %s223 = scalar_lea.sflag [#allocation5], %s222
        %s224 = sand.u32 %s114, 1
        %s225 = smul.addr %s224, 2
        %s226 = scalar_lea.vmem [#allocation8], %s225
        %s227 = smul.u32 2, %s30
        %s228 = smul.u32 2, %s30
        %v230 = vld [vmem:[%s193] sm:$0x1]
        %vm231 = vcmask 57344
        %232 = vst.msk [vmem:[#allocation2] sm:$0x1] %vm231, %v230
        %v233 = vld [vmem:[#allocation2] sm:$0x1]
        %v234 = vpack.c.bf16 %v233, %v233
        %v235 = vld [vmem:[%s202] sm:$0xff]
        %v237 = vunpack.c.l.b16 %v235
        %v238 = vunpack.c.h.b16 %v235
        %v239 = vpack.c.b16 %v237, %v237
        %v240 = vpack.c.b16 %v238, %v238
        %vm241 = vcmask 64512
        %v243 = vsel %vm241, %v234, 0
        %vm245 = vcmask 1043456
        %v247 = vsel %vm245, %v239, 0
        %v250 = vsel %vm245, %v240, 0
        %252 = vmatprep.subr.bf16.mxu0 0
        %253 = vmatpush1.bf16.msra.mxu0 0
        %254 = vmatprep.subr.bf16.mxu0 0
        %255 = vmatpush1.bf16.msra.mxu0 0
        %256 = vmatprep.subr.bf16.mxu0 0
        %257 = vmatpush1.bf16.msra.mxu0 0
        %258 = vmatprep.subr.bf16.mxu0 0
        %259 = vmatpush1.bf16.msra.mxu0 0
        %260 = vmatprep.subr.bf16.mxu0 0
        %261 = vmatpush1.bf16.msra.mxu0 0
        %262 = vmatprep.subr.bf16.mxu0 0
        %263 = vmatpush1.bf16.msra.mxu0 0
        %264 = vmatprep.subr.bf16.mxu0 0
        %265 = vmatpush1.bf16.msra.mxu0 0
        %266 = vmatprep.subr.bf16.mxu0 %v250
        %267 = vmatpush1.bf16.msra.mxu0 %v247
        %268 = vmatprep.subr.bf16.mxu0 0
        %269 = vmatpush2.bf16.msra.mxu0 0
        %270 = vmatprep.subr.bf16.mxu0 0
        %271 = vmatpush2.bf16.msra.mxu0 0
        %272 = vmatprep.subr.bf16.mxu0 0
        %273 = vmatpush2.bf16.msra.mxu0 0
        %274 = vmatprep.subr.bf16.mxu0 0
        %275 = vmatpush2.bf16.msra.mxu0 0
        %276 = vmatprep.subr.bf16.mxu0 0
        %277 = vmatpush2.bf16.msra.mxu0 0
        %278 = vmatprep.subr.bf16.mxu0 0
        %279 = vmatpush2.bf16.msra.mxu0 0
        %280 = vmatprep.subr.bf16.mxu0 0
        %281 = vmatpush2.bf16.msra.mxu0 0
        %282 = vmatprep.subr.bf16.mxu0 0
        %283 = vmatpush2.bf16.msra.mxu0 0
        %284 = vmatprep.mubr.bf16.mxu0 0
        %285 = vmatmul.mubr.bf16.gmra.mxu0 %v243
        %v286 = vpop.f32.mrf.mxu0
        %v287 = vadd.f32 0.0, %v286
        %v288 = vpop.f32.mrf.mxu0
        %v289 = vadd.f32 0.0, %v288
        %v290 = vpop.f32.mrf.mxu0
        %v291 = vpop.f32.mrf.mxu0
        %292 = vdwg.mxu0
        %v295 = vcombine.low %v287, %v289
        %v297 = vunpack.c.l.s4 1966171168
        %v298 = vunpack.c.0.s8 %v297
        %v299 = vlaneseq
        %v300 = vshrl.u32 %v299, 7
        %v301 = vsub.s32 %v298, %v300
        %v302 = vrot.slane %v295, %v301
        %v304 = vunpack.c.l.s4 1966171168
        %v305 = vunpack.c.0.s8 %v304
        %v306 = vlaneseq
        %v307 = vshrl.u32 %v306, 7
        %v308 = vsub.s32 %v305, %v307
        %v309 = vrot.slane %v302, %v308
        %v311 = vlaneseq
        %vm312 = vcmp.ge.s32.totalorder %v311, 0
        %vm313 = vcmp.lt.s32.totalorder %v311, 256
        %vm314 = vmand %vm312, %vm313
        %315 = vst.msk [vmem:[%s226] sm:$0x3] %vm314, %v309
        %s316 = sand.u32 %s114, 1
        %s317 = scalar_lea.sflag [#allocation5], %s316
        %s318 = sand.u32 %s114, 1
        %s319 = smul.addr %s318, 2
        %s320 = scalar_lea.vmem [#allocation8], %s319
        // Predicated region
        $region37: #{tpu_custom_call.1} parent=27 // pred_check
          %p321 = pneg %p124
        $region38: #{tpu_custom_call.1} parent=27 // pred_check_branch
          %323 = sbr.rel (%p321) target = $region40
        $region39: #{tpu_custom_call.1} parent=27 // pred_region
          %s324 = smul.u32 2, %s30
          %s326 = ssub.s32 32, 32
          %327 = vsyncadd %s317, %s326
          %s328 = smul.addr %s29, 8
          %s329 = sadd.s32 %s324, %s328
          %s330 = smul.addr %s28, 8
          %s331 = sadd.s32 %s329, %s330
          %s332 = smul.addr %s331, 16
          %s333 = scalar_lea.hbm %s2, %s332
          %s335 = sshll.u32 %s320, 4
          %s336 = int_to_ptr.vmem [resolvable:$true] %s335
          %338 = dma.vmem_to_hbm [thread:$0]  %s336, 32, %s333, %s317
        $region40: #{tpu_custom_call.1} parent=27 // pred_fallthru
          _
      $region28: #{tpu_custom_call.1} parent=5 // pred_fallthru
        _
      %p339 = scmp.le.s32.totalorder 2, %s17
      // Predicated region
      $region41: #{tpu_custom_call.1} parent=5 // pred_check
        %p340 = pneg %p339
      $region42: #{tpu_custom_call.1} parent=5 // pred_check_branch
        %342 = sbr.rel (%p340) target = $region44
      $region43: #{tpu_custom_call.1} parent=5 // pred_region
        %s343 = ssub.s32 %s17, 2
        // Predicated region
        $region45: #{tpu_custom_call.1} parent=43 // pred_check
          %p344 = pneg %p130
        $region46: #{tpu_custom_call.1} parent=43 // pred_check_branch
          %346 = sbr.rel (%p344) target = $region48
        $region47: #{tpu_custom_call.1} parent=43 // pred_region
          %s347 = sand.u32 %s115, 1
          %s348 = scalar_lea.sflag [#allocation5], %s347
          %s349 = sand.u32 %s115, 1
          %s350 = smul.addr %s349, 2
          %s351 = scalar_lea.vmem [#allocation8], %s350
          %352 = dma.done %s348, 32
        $region48: #{tpu_custom_call.1} parent=43 // pred_fallthru
          _
      $region44: #{tpu_custom_call.1} parent=5 // pred_fallthru
        _
    $region6: #{tpu_custom_call.1} parent=1 // loop_footer
      %s21 = sadd.s32 1, %s17
    $region7: #{tpu_custom_call.1} parent=1 // loop_footer_branch
      %16 = sbr.rel target = $region3
    $region8: #{tpu_custom_call.1} parent=1 // loop_exit
      _
    %353 = vsyncpa [#allocation4], 1
    %s354 = scalar_lea.sflag [#allocation4], 1
    %355 = vsyncpa %s354, 1
    %356 = vsyncpa [#allocation7], 1
    %s357 = scalar_lea.sflag [#allocation7], 1
    %358 = vsyncpa %s357, 1
    %359 = vsyncpa [#allocation5], 1
    %s360 = scalar_lea.sflag [#allocation5], 1
    %361 = vsyncpa %s360, 1

</llo_original>
